<compile_context>
chip_gen: v7x
topology: tpu7x:2x2x1
jax: 0.10.0
libtpu: 0.0.40
codegen_flags: <defaults>
</compile_context>

<pallas_src>
import functools
import random

import jax
import jax.numpy as jnp
from jax.experimental import pallas as pl
from jax.experimental.pallas import tpu as pltpu

ALPHA_LIST = [0.03, 0.04, 0.05, 0.06, 0.07, 0.08, 0.09, 0.1]

# sublane sub-tile: (16, 128) slabs keep the streaming working set
# (~9 running slabs + a few per-channel temporaries) well inside 64 vregs.
_SUB_ROWS = 16


def _bootstrap_kernel(mn_ref, inv_ref, alpha_ref,          # SMEM scalars
                      masks_ref, plab_ref, teach_ref,      # (1, C, Rt, 128) VMEM
                      cat_ref, unc_ref, lbl_ref,           # (1, Rt, 128) VMEM
                      *, inv_perm):
    C = masks_ref.shape[1]
    Rt = masks_ref.shape[2]
    n_sub = Rt // _SUB_ROWS

    b = pl.program_id(0)
    mn = mn_ref[b]                    # per-sample min(pseudo_label)
    half_inv = 0.5 * inv_ref[b]       # 0.5 / (max - min), precomputed in XLA
    alpha = alpha_ref[0]

    @pl.loop(0, n_sub)
    def _(s):
        r0 = pl.multiple_of(s * _SUB_ROWS, _SUB_ROWS)
        rows = pl.ds(r0, _SUB_ROWS)
        one = jnp.float32(1.0)

        def ld(ref, c):
            # one (16, 128) channel slab, upcast per channel (no block-wide astype)
            return ref[0, c, rows, :].astype(jnp.float32)

        # ---- pass 1: teacher channel max + exp-sum (online, 1 exp / channel) ----
        t_max = ld(teach_ref, 0)
        t_sum = jnp.ones(t_max.shape, jnp.float32)
        for c in range(1, C):
            tc = ld(teach_ref, c)
            gt = tc > t_max
            new_max = jnp.maximum(t_max, tc)
            e = jnp.exp(jnp.minimum(tc, t_max) - new_max)        # exp(-|tc - t_max|)
            t_sum = t_sum * jnp.where(gt, e, one) + jnp.where(gt, one, e)
            t_max = new_max
        t_scale = 0.5 / t_sum        # exact divide: feeds the discrete argmax

        # ---- pass 2: single streaming channel loop ----
        #   * positive argmax of 0.5*teacher_softmax + 0.5*minmax(pseudo_label)
        #   * CE gathers (positive channel, and inv_perm[channel] for the
        #     negative branch: argmax over permuted channels == inv_perm[argmax])
        #   * streaming top-2 + online logsumexp denominator of the mask logits
        m0 = ld(masks_ref, 0)
        best = (jnp.exp(ld(teach_ref, 0) - t_max) * t_scale
                + (ld(plab_ref, 0) - mn) * half_inv)
        labels = jnp.zeros(m0.shape, jnp.int32)
        gat_pos = m0
        gat_neg = m0 if inv_perm[0] == 0 else ld(masks_ref, inv_perm[0])
        top1 = m0
        top2 = jnp.full(m0.shape, -jnp.inf, jnp.float32)
        denom = jnp.ones(m0.shape, jnp.float32)

        for c in range(1, C):
            mc = ld(masks_ref, c)
            v = (jnp.exp(ld(teach_ref, c) - t_max) * t_scale
                 + (ld(plab_ref, c) - mn) * half_inv)

            take = v > best
            best = jnp.where(take, v, best)
            labels = jnp.where(take, jnp.int32(c), labels)
            gat_pos = jnp.where(take, mc, gat_pos)
            mneg = mc if inv_perm[c] == c else ld(masks_ref, inv_perm[c])
            gat_neg = jnp.where(take, mneg, gat_neg)

            gt = mc > top1
            new_top1 = jnp.maximum(top1, mc)
            e = jnp.exp(jnp.minimum(mc, top1) - new_top1)        # exp(-|mc - top1|)
            denom = denom * jnp.where(gt, e, one) + jnp.where(gt, one, e)
            top2 = jnp.where(gt, top1, jnp.maximum(top2, mc))
            top1 = new_top1

        base = top1 + jnp.log(denom)                    # per-pixel logsumexp(logits)
        inv_denom = pl.reciprocal(denom, approx=True)   # EUP; continuous path only

        cat_ref[0, rows, :] = (base - gat_pos) - alpha * (base - gat_neg)
        # softmax top-1 prob == 1/denom, top-2 prob == exp(top2 - top1)/denom
        unc_ref[0, rows, :] = 1.0 - (1.0 - jnp.exp(top2 - top1)) * inv_denom
        lbl_ref[0, rows, :] = labels


def _vmem_budgets():
    """(block budget, vmem_limit_bytes) picked per TPU generation."""
    cap = None
    try:
        cap = getattr(pltpu.get_tpu_info(), "vmem_capacity_bytes", None)
    except Exception:
        cap = None
    if not cap:
        cap = 64 * 1024 * 1024                       # conservative: v7x physical
    if cap <= 64 * 1024 * 1024:                      # v7x-class (64 MiB physical)
        return 16 * 1024 * 1024, 40 * 1024 * 1024
    return 48 * 1024 * 1024, 96 * 1024 * 1024        # v5e / v6e (128 MiB)


def _pick_row_tile(R, C, N, in_itemsize, block_budget):
    """Rows (of 128 pixels) per grid step. R is always a multiple of 16."""
    # approx block VMEM per row: 3 inputs x C channels (double-buffered) +
    # 3 f32 outputs (double-buffered); sub-tile temporaries are a small constant.
    per_row = (3 * C * in_itemsize * 2 + 3 * 4 * 2) * 128
    target = max(16, int(block_budget // per_row))
    if R <= target:
        r_tile = R
    else:
        r_tile = max(16, (min(target, R) // 16) * 16)
        # prefer an exact divisor of R within ~25% of the target (avoids a ragged
        # last block); otherwise keep the ragged tile and let the grid use cdiv.
        lo = max(16, ((r_tile * 3 // 4) // 16) * 16)
        for cand in range(r_tile, lo - 1, -16):
            if R % cand == 0:
                r_tile = cand
                break
    # keep >= ~4 spatial steps per sample so the "parallel" grid can feed both
    # TensorCores on v7x even at small batch.
    if R >= 64 and N * (-(-R // r_tile)) < 8:
        r_tile = max(16, ((R // 4) // 16) * 16)
    return r_tile


def bootstrap_loss_forward(masks, pseudo_label, pseudo_label_teacher, epoch,
                           input_dtype=jnp.bfloat16):
    """JAX/Pallas equivalent of bootstrap_loss.forward (teacher always given).

    Dense inputs are shipped to the kernel as `input_dtype` (default bf16:
    halves HBM traffic; arithmetic stays f32). Pass jnp.float32 for
    bit-faithful inputs.
    """
    N, C, h, w = masks.shape
    HW = h * w

    alpha = ALPHA_LIST[epoch] if epoch < len(ALPHA_LIST) else ALPHA_LIST[-1]
    alpha_arr = jnp.full((1,), alpha, dtype=jnp.float32)   # runtime scalar

    # deterministic host-side channel shuffle (torch uses random.shuffle)
    idx_list = list(range(C))
    random.Random(0).shuffle(idx_list)
    inv_perm = [0] * C
    for pos, ch in enumerate(idx_list):
        inv_perm[ch] = pos            # position of channel `ch` in the shuffle

    # per-sample min / 1/(max-min) of pseudo_label: single fused XLA read,
    # hoisted out of the kernel (global reductions would block spatial tiling).
    mn = jnp.min(pseudo_label, axis=(1, 2, 3)).astype(jnp.float32)
    mx = jnp.max(pseudo_label, axis=(1, 2, 3)).astype(jnp.float32)
    inv_rng = 1.0 / (mx - mn)         # same div-by-zero hazard as torch

    # lane/sublane-dense layout: pad HW up to a multiple of 16*128 so every block
    # is a dense (16k, 128) slab for any resolution; padded pixels are computed
    # and sliced away (all math is per-pixel, so they never touch real pixels).
    L = 128
    pad_unit = _SUB_ROWS * L
    HW_pad = -(-HW // pad_unit) * pad_unit
    R = HW_pad // L

    def to_blocks(x):
        x = x.reshape(N, C, HW)
        if HW_pad != HW:
            x = jnp.pad(x, ((0, 0), (0, 0), (0, HW_pad - HW)))
        return x.astype(input_dtype).reshape(N, C, R, L)

    m4 = to_blocks(masks)
    p4 = to_blocks(pseudo_label)
    t4 = to_blocks(pseudo_label_teacher)

    block_budget, vmem_limit = _vmem_budgets()
    r_tile = _pick_row_tile(R, C, N, jnp.dtype(input_dtype).itemsize, block_budget)
    n_r = -(-R // r_tile)             # ragged last block is fine (elementwise)

    kernel = functools.partial(_bootstrap_kernel, inv_perm=tuple(inv_perm))

    smem_spec = pl.BlockSpec(memory_space=pltpu.MemorySpace.SMEM)
    in_spec = pl.BlockSpec((1, C, r_tile, L), lambda b, r: (b, 0, r, 0))
    out_spec = pl.BlockSpec((1, r_tile, L), lambda b, r: (b, r, 0))

    loss_cat, loss_unc, labels = pl.pallas_call(
        kernel,
        out_shape=(
            jax.ShapeDtypeStruct((N, R, L), jnp.float32),
            jax.ShapeDtypeStruct((N, R, L), jnp.float32),
            # TODO(synk): emit int8 labels (C << 128) once sub-32-bit output
            # tiling is verified on every generation; int32 keeps stores simple.
            jax.ShapeDtypeStruct((N, R, L), jnp.int32),
        ),
        grid=(N, n_r),
        in_specs=[smem_spec, smem_spec, smem_spec, in_spec, in_spec, in_spec],
        out_specs=(out_spec, out_spec, out_spec),
        compiler_params=pltpu.CompilerParams(
            dimension_semantics=("parallel", "parallel"),
            vmem_limit_bytes=vmem_limit),
    )(mn, inv_rng, alpha_arr, m4, p4, t4)

    def unblock(x):
        return x.reshape(N, HW_pad)[:, :HW].reshape(N, h, w)

    return unblock(loss_cat), unblock(loss_unc), unblock(labels)


if __name__ == "__main__":
    key = jax.random.PRNGKey(0)
    k1, k2, k3 = jax.random.split(key, 3)

    N, C, H, W = 2, 4, 16, 16
    masks = jax.random.normal(k1, (N, C, H, W), dtype=jnp.float32)
    pseudo_label = jax.random.uniform(k2, (N, C, H, W), dtype=jnp.float32)
    pseudo_label_teacher = jax.random.normal(k3, (N, C, H, W), dtype=jnp.float32)
    epoch = 3

    loss_cat, loss_uncertainty, boot_labels = bootstrap_loss_forward(
        masks, pseudo_label, pseudo_label_teacher, epoch)

    jax.block_until_ready((loss_cat, loss_uncertainty, boot_labels))
    assert loss_cat.shape == (N, H, W)
    assert loss_uncertainty.shape == (N, H, W)
    assert boot_labels.shape == (N, H, W)
    assert bool(jnp.isfinite(loss_cat).all())
    assert bool(jnp.isfinite(loss_uncertainty).all())
    print("KERNEL_OK")
</pallas_src>

<mosaic_0001>
module attributes {stable_mosaic.version = 11 : i64} {
  func.func @_bootstrap_kernel(%arg0: i32, %arg1: i32, %arg2: memref<2xf32, #tpu.memory_space<smem>>, %arg3: memref<2xf32, #tpu.memory_space<smem>>, %arg4: memref<1xf32, #tpu.memory_space<smem>>, %arg5: memref<1x4x16x128xbf16, #tpu.memory_space<vmem>>, %arg6: memref<1x4x16x128xbf16, #tpu.memory_space<vmem>>, %arg7: memref<1x4x16x128xbf16, #tpu.memory_space<vmem>>, %arg8: memref<1x16x128xf32, #tpu.memory_space<vmem>>, %arg9: memref<1x16x128xf32, #tpu.memory_space<vmem>>, %arg10: memref<1x16x128xi32, #tpu.memory_space<vmem>>) attributes {dimension_semantics = [#tpu.dimension_semantics<parallel>, #tpu.dimension_semantics<parallel>], iteration_bounds = array<i64: 2, 1>, scalar_prefetch = 0 : i64, scratch_operands = 0 : i64, tpu.core_type = #tpu.core_type<tc>, window_params = [{transform_indices = @transform_0, window_bounds = array<i64: 2>}, {transform_indices = @transform_1, window_bounds = array<i64: 2>}, {transform_indices = @transform_2, window_bounds = array<i64: 1>}, {transform_indices = @transform_3, window_bounds = array<i64: 1, 4, 16, 128>}, {transform_indices = @transform_4, window_bounds = array<i64: 1, 4, 16, 128>}, {transform_indices = @transform_5, window_bounds = array<i64: 1, 4, 16, 128>}, {transform_indices = @transform_6, window_bounds = array<i64: 1, 16, 128>}, {transform_indices = @transform_7, window_bounds = array<i64: 1, 16, 128>}, {transform_indices = @transform_8, window_bounds = array<i64: 1, 16, 128>}]} {
    %0 = arith.index_cast %arg0 : i32 to index
    %1 = memref.load %arg2[%0] : memref<2xf32, #tpu.memory_space<smem>>
    %2 = arith.index_cast %arg0 : i32 to index
    %3 = memref.load %arg3[%2] : memref<2xf32, #tpu.memory_space<smem>>
    %cst = arith.constant 5.000000e-01 : f32
    %4 = arith.mulf %cst, %3 : f32
    %c0 = arith.constant 0 : index
    %5 = memref.load %arg4[%c0] : memref<1xf32, #tpu.memory_space<smem>>
    %c0_i32 = arith.constant 0 : i32
    %c1_i32 = arith.constant 1 : i32
    %6 = arith.muli %c0_i32, %c1_i32 : i32
    %c0_i32_0 = arith.constant 0 : i32
    %7 = arith.addi %c0_i32_0, %6 : i32
    %c16_i32 = arith.constant 16 : i32
    %8 = arith.muli %7, %c16_i32 : i32
    %9 = tpu.assume_multiple %8, 16 : i32
    %c0_1 = arith.constant 0 : index
    %c0_2 = arith.constant 0 : index
    %10 = arith.index_cast %9 : i32 to index
    %c0_3 = arith.constant 0 : index
    %11 = vector.load %arg7[%c0_1, %c0_2, %10, %c0_3] : memref<1x4x16x128xbf16, #tpu.memory_space<vmem>>, vector<1x1x16x128xbf16>
    %12 = vector.shape_cast %11 : vector<1x1x16x128xbf16> to vector<16x128xbf16>
    %13 = arith.extf %12 : vector<16x128xbf16> to vector<16x128xf32>
    %cst_4 = arith.constant 1.000000e+00 : f32
    %14 = vector.broadcast %cst_4 : f32 to vector<16x128xf32>
    %c0_5 = arith.constant 0 : index
    %c1 = arith.constant 1 : index
    %15 = arith.index_cast %9 : i32 to index
    %c0_6 = arith.constant 0 : index
    %16 = vector.load %arg7[%c0_5, %c1, %15, %c0_6] : memref<1x4x16x128xbf16, #tpu.memory_space<vmem>>, vector<1x1x16x128xbf16>
    %17 = vector.shape_cast %16 : vector<1x1x16x128xbf16> to vector<16x128xbf16>
    %18 = arith.extf %17 : vector<16x128xbf16> to vector<16x128xf32>
    %19 = arith.cmpf ogt, %18, %13 : vector<16x128xf32>
    %20 = arith.maximumf %13, %18 : vector<16x128xf32>
    %21 = arith.minimumf %18, %13 : vector<16x128xf32>
    %22 = arith.subf %21, %20 : vector<16x128xf32>
    %23 = math.exp %22 : vector<16x128xf32>
    %cst_7 = arith.constant 1.000000e+00 : f32
    %24 = vector.broadcast %cst_7 : f32 to vector<16x128xf32>
    %25 = arith.select %19, %23, %24 : vector<16x128xi1>, vector<16x128xf32>
    %26 = arith.mulf %14, %25 : vector<16x128xf32>
    %cst_8 = arith.constant 1.000000e+00 : f32
    %27 = vector.broadcast %cst_8 : f32 to vector<16x128xf32>
    %28 = arith.select %19, %27, %23 : vector<16x128xi1>, vector<16x128xf32>
    %29 = arith.addf %26, %28 : vector<16x128xf32>
    %c0_9 = arith.constant 0 : index
    %c2 = arith.constant 2 : index
    %30 = arith.index_cast %9 : i32 to index
    %c0_10 = arith.constant 0 : index
    %31 = vector.load %arg7[%c0_9, %c2, %30, %c0_10] : memref<1x4x16x128xbf16, #tpu.memory_space<vmem>>, vector<1x1x16x128xbf16>
    %32 = vector.shape_cast %31 : vector<1x1x16x128xbf16> to vector<16x128xbf16>
    %33 = arith.extf %32 : vector<16x128xbf16> to vector<16x128xf32>
    %34 = arith.cmpf ogt, %33, %20 : vector<16x128xf32>
    %35 = arith.maximumf %20, %33 : vector<16x128xf32>
    %36 = arith.minimumf %33, %20 : vector<16x128xf32>
    %37 = arith.subf %36, %35 : vector<16x128xf32>
    %38 = math.exp %37 : vector<16x128xf32>
    %cst_11 = arith.constant 1.000000e+00 : f32
    %39 = vector.broadcast %cst_11 : f32 to vector<16x128xf32>
    %40 = arith.select %34, %38, %39 : vector<16x128xi1>, vector<16x128xf32>
    %41 = arith.mulf %29, %40 : vector<16x128xf32>
    %cst_12 = arith.constant 1.000000e+00 : f32
    %42 = vector.broadcast %cst_12 : f32 to vector<16x128xf32>
    %43 = arith.select %34, %42, %38 : vector<16x128xi1>, vector<16x128xf32>
    %44 = arith.addf %41, %43 : vector<16x128xf32>
    %c0_13 = arith.constant 0 : index
    %c3 = arith.constant 3 : index
    %45 = arith.index_cast %9 : i32 to index
    %c0_14 = arith.constant 0 : index
    %46 = vector.load %arg7[%c0_13, %c3, %45, %c0_14] : memref<1x4x16x128xbf16, #tpu.memory_space<vmem>>, vector<1x1x16x128xbf16>
    %47 = vector.shape_cast %46 : vector<1x1x16x128xbf16> to vector<16x128xbf16>
    %48 = arith.extf %47 : vector<16x128xbf16> to vector<16x128xf32>
    %49 = arith.cmpf ogt, %48, %35 : vector<16x128xf32>
    %50 = arith.maximumf %35, %48 : vector<16x128xf32>
    %51 = arith.minimumf %48, %35 : vector<16x128xf32>
    %52 = arith.subf %51, %50 : vector<16x128xf32>
    %53 = math.exp %52 : vector<16x128xf32>
    %cst_15 = arith.constant 1.000000e+00 : f32
    %54 = vector.broadcast %cst_15 : f32 to vector<16x128xf32>
    %55 = arith.select %49, %53, %54 : vector<16x128xi1>, vector<16x128xf32>
    %56 = arith.mulf %44, %55 : vector<16x128xf32>
    %cst_16 = arith.constant 1.000000e+00 : f32
    %57 = vector.broadcast %cst_16 : f32 to vector<16x128xf32>
    %58 = arith.select %49, %57, %53 : vector<16x128xi1>, vector<16x128xf32>
    %59 = arith.addf %56, %58 : vector<16x128xf32>
    %cst_17 = arith.constant 5.000000e-01 : f32
    %60 = vector.broadcast %cst_17 : f32 to vector<16x128xf32>
    %61 = arith.divf %60, %59 : vector<16x128xf32>
    %c0_18 = arith.constant 0 : index
    %c0_19 = arith.constant 0 : index
    %62 = arith.index_cast %9 : i32 to index
    %c0_20 = arith.constant 0 : index
    %63 = vector.load %arg5[%c0_18, %c0_19, %62, %c0_20] : memref<1x4x16x128xbf16, #tpu.memory_space<vmem>>, vector<1x1x16x128xbf16>
    %64 = vector.shape_cast %63 : vector<1x1x16x128xbf16> to vector<16x128xbf16>
    %65 = arith.extf %64 : vector<16x128xbf16> to vector<16x128xf32>
    %c0_21 = arith.constant 0 : index
    %c0_22 = arith.constant 0 : index
    %66 = arith.index_cast %9 : i32 to index
    %c0_23 = arith.constant 0 : index
    %67 = vector.load %arg7[%c0_21, %c0_22, %66, %c0_23] : memref<1x4x16x128xbf16, #tpu.memory_space<vmem>>, vector<1x1x16x128xbf16>
    %68 = vector.shape_cast %67 : vector<1x1x16x128xbf16> to vector<16x128xbf16>
    %69 = arith.extf %68 : vector<16x128xbf16> to vector<16x128xf32>
    %70 = arith.subf %69, %50 : vector<16x128xf32>
    %71 = math.exp %70 : vector<16x128xf32>
    %72 = arith.mulf %71, %61 : vector<16x128xf32>
    %c0_24 = arith.constant 0 : index
    %c0_25 = arith.constant 0 : index
    %73 = arith.index_cast %9 : i32 to index
    %c0_26 = arith.constant 0 : index
    %74 = vector.load %arg6[%c0_24, %c0_25, %73, %c0_26] : memref<1x4x16x128xbf16, #tpu.memory_space<vmem>>, vector<1x1x16x128xbf16>
    %75 = vector.shape_cast %74 : vector<1x1x16x128xbf16> to vector<16x128xbf16>
    %76 = arith.extf %75 : vector<16x128xbf16> to vector<16x128xf32>
    %77 = vector.broadcast %1 : f32 to vector<16x128xf32>
    %78 = arith.subf %76, %77 : vector<16x128xf32>
    %79 = vector.broadcast %4 : f32 to vector<16x128xf32>
    %80 = arith.mulf %78, %79 : vector<16x128xf32>
    %81 = arith.addf %72, %80 : vector<16x128xf32>
    %c0_i32_27 = arith.constant 0 : i32
    %82 = vector.broadcast %c0_i32_27 : i32 to vector<16x128xi32>
    %c0_28 = arith.constant 0 : index
    %c1_29 = arith.constant 1 : index
    %83 = arith.index_cast %9 : i32 to index
    %c0_30 = arith.constant 0 : index
    %84 = vector.load %arg5[%c0_28, %c1_29, %83, %c0_30] : memref<1x4x16x128xbf16, #tpu.memory_space<vmem>>, vector<1x1x16x128xbf16>
    %85 = vector.shape_cast %84 : vector<1x1x16x128xbf16> to vector<16x128xbf16>
    %86 = arith.extf %85 : vector<16x128xbf16> to vector<16x128xf32>
    %cst_31 = arith.constant 0xFF800000 : f32
    %87 = vector.broadcast %cst_31 : f32 to vector<16x128xf32>
    %cst_32 = arith.constant 1.000000e+00 : f32
    %88 = vector.broadcast %cst_32 : f32 to vector<16x128xf32>
    %c0_33 = arith.constant 0 : index
    %c1_34 = arith.constant 1 : index
    %89 = arith.index_cast %9 : i32 to index
    %c0_35 = arith.constant 0 : index
    %90 = vector.load %arg5[%c0_33, %c1_34, %89, %c0_35] : memref<1x4x16x128xbf16, #tpu.memory_space<vmem>>, vector<1x1x16x128xbf16>
    %91 = vector.shape_cast %90 : vector<1x1x16x128xbf16> to vector<16x128xbf16>
    %92 = arith.extf %91 : vector<16x128xbf16> to vector<16x128xf32>
    %c0_36 = arith.constant 0 : index
    %c1_37 = arith.constant 1 : index
    %93 = arith.index_cast %9 : i32 to index
    %c0_38 = arith.constant 0 : index
    %94 = vector.load %arg7[%c0_36, %c1_37, %93, %c0_38] : memref<1x4x16x128xbf16, #tpu.memory_space<vmem>>, vector<1x1x16x128xbf16>
    %95 = vector.shape_cast %94 : vector<1x1x16x128xbf16> to vector<16x128xbf16>
    %96 = arith.extf %95 : vector<16x128xbf16> to vector<16x128xf32>
    %97 = arith.subf %96, %50 : vector<16x128xf32>
    %98 = math.exp %97 : vector<16x128xf32>
    %99 = arith.mulf %98, %61 : vector<16x128xf32>
    %c0_39 = arith.constant 0 : index
    %c1_40 = arith.constant 1 : index
    %100 = arith.index_cast %9 : i32 to index
    %c0_41 = arith.constant 0 : index
    %101 = vector.load %arg6[%c0_39, %c1_40, %100, %c0_41] : memref<1x4x16x128xbf16, #tpu.memory_space<vmem>>, vector<1x1x16x128xbf16>
    %102 = vector.shape_cast %101 : vector<1x1x16x128xbf16> to vector<16x128xbf16>
    %103 = arith.extf %102 : vector<16x128xbf16> to vector<16x128xf32>
    %104 = vector.broadcast %1 : f32 to vector<16x128xf32>
    %105 = arith.subf %103, %104 : vector<16x128xf32>
    %106 = vector.broadcast %4 : f32 to vector<16x128xf32>
    %107 = arith.mulf %105, %106 : vector<16x128xf32>
    %108 = arith.addf %99, %107 : vector<16x128xf32>
    %109 = arith.cmpf ogt, %108, %81 : vector<16x128xf32>
    %110 = arith.select %109, %108, %81 : vector<16x128xi1>, vector<16x128xf32>
    %c1_i32_42 = arith.constant 1 : i32
    %111 = vector.broadcast %c1_i32_42 : i32 to vector<16x128xi32>
    %112 = arith.select %109, %111, %82 : vector<16x128xi1>, vector<16x128xi32>
    %113 = arith.select %109, %92, %65 : vector<16x128xi1>, vector<16x128xf32>
    %c0_43 = arith.constant 0 : index
    %c2_44 = arith.constant 2 : index
    %114 = arith.index_cast %9 : i32 to index
    %c0_45 = arith.constant 0 : index
    %115 = vector.load %arg5[%c0_43, %c2_44, %114, %c0_45] : memref<1x4x16x128xbf16, #tpu.memory_space<vmem>>, vector<1x1x16x128xbf16>
    %116 = vector.shape_cast %115 : vector<1x1x16x128xbf16> to vector<16x128xbf16>
    %117 = arith.extf %116 : vector<16x128xbf16> to vector<16x128xf32>
    %118 = arith.select %109, %117, %86 : vector<16x128xi1>, vector<16x128xf32>
    %119 = arith.cmpf ogt, %92, %65 : vector<16x128xf32>
    %120 = arith.maximumf %65, %92 : vector<16x128xf32>
    %121 = arith.minimumf %92, %65 : vector<16x128xf32>
    %122 = arith.subf %121, %120 : vector<16x128xf32>
    %123 = math.exp %122 : vector<16x128xf32>
    %cst_46 = arith.constant 1.000000e+00 : f32
    %124 = vector.broadcast %cst_46 : f32 to vector<16x128xf32>
    %125 = arith.select %119, %123, %124 : vector<16x128xi1>, vector<16x128xf32>
    %126 = arith.mulf %88, %125 : vector<16x128xf32>
    %cst_47 = arith.constant 1.000000e+00 : f32
    %127 = vector.broadcast %cst_47 : f32 to vector<16x128xf32>
    %128 = arith.select %119, %127, %123 : vector<16x128xi1>, vector<16x128xf32>
    %129 = arith.addf %126, %128 : vector<16x128xf32>
    %130 = arith.maximumf %87, %92 : vector<16x128xf32>
    %131 = arith.select %119, %65, %130 : vector<16x128xi1>, vector<16x128xf32>
    %c0_48 = arith.constant 0 : index
    %c2_49 = arith.constant 2 : index
    %132 = arith.index_cast %9 : i32 to index
    %c0_50 = arith.constant 0 : index
    %133 = vector.load %arg5[%c0_48, %c2_49, %132, %c0_50] : memref<1x4x16x128xbf16, #tpu.memory_space<vmem>>, vector<1x1x16x128xbf16>
    %134 = vector.shape_cast %133 : vector<1x1x16x128xbf16> to vector<16x128xbf16>
    %135 = arith.extf %134 : vector<16x128xbf16> to vector<16x128xf32>
    %c0_51 = arith.constant 0 : index
    %c2_52 = arith.constant 2 : index
    %136 = arith.index_cast %9 : i32 to index
    %c0_53 = arith.constant 0 : index
    %137 = vector.load %arg7[%c0_51, %c2_52, %136, %c0_53] : memref<1x4x16x128xbf16, #tpu.memory_space<vmem>>, vector<1x1x16x128xbf16>
    %138 = vector.shape_cast %137 : vector<1x1x16x128xbf16> to vector<16x128xbf16>
    %139 = arith.extf %138 : vector<16x128xbf16> to vector<16x128xf32>
    %140 = arith.subf %139, %50 : vector<16x128xf32>
    %141 = math.exp %140 : vector<16x128xf32>
    %142 = arith.mulf %141, %61 : vector<16x128xf32>
    %c0_54 = arith.constant 0 : index
    %c2_55 = arith.constant 2 : index
    %143 = arith.index_cast %9 : i32 to index
    %c0_56 = arith.constant 0 : index
    %144 = vector.load %arg6[%c0_54, %c2_55, %143, %c0_56] : memref<1x4x16x128xbf16, #tpu.memory_space<vmem>>, vector<1x1x16x128xbf16>
    %145 = vector.shape_cast %144 : vector<1x1x16x128xbf16> to vector<16x128xbf16>
    %146 = arith.extf %145 : vector<16x128xbf16> to vector<16x128xf32>
    %147 = vector.broadcast %1 : f32 to vector<16x128xf32>
    %148 = arith.subf %146, %147 : vector<16x128xf32>
    %149 = vector.broadcast %4 : f32 to vector<16x128xf32>
    %150 = arith.mulf %148, %149 : vector<16x128xf32>
    %151 = arith.addf %142, %150 : vector<16x128xf32>
    %152 = arith.cmpf ogt, %151, %110 : vector<16x128xf32>
    %153 = arith.select %152, %151, %110 : vector<16x128xi1>, vector<16x128xf32>
    %c2_i32 = arith.constant 2 : i32
    %154 = vector.broadcast %c2_i32 : i32 to vector<16x128xi32>
    %155 = arith.select %152, %154, %112 : vector<16x128xi1>, vector<16x128xi32>
    %156 = arith.select %152, %135, %113 : vector<16x128xi1>, vector<16x128xf32>
    %c0_57 = arith.constant 0 : index
    %c0_58 = arith.constant 0 : index
    %157 = arith.index_cast %9 : i32 to index
    %c0_59 = arith.constant 0 : index
    %158 = vector.load %arg5[%c0_57, %c0_58, %157, %c0_59] : memref<1x4x16x128xbf16, #tpu.memory_space<vmem>>, vector<1x1x16x128xbf16>
    %159 = vector.shape_cast %158 : vector<1x1x16x128xbf16> to vector<16x128xbf16>
    %160 = arith.extf %159 : vector<16x128xbf16> to vector<16x128xf32>
    %161 = arith.select %152, %160, %118 : vector<16x128xi1>, vector<16x128xf32>
    %162 = arith.cmpf ogt, %135, %120 : vector<16x128xf32>
    %163 = arith.maximumf %120, %135 : vector<16x128xf32>
    %164 = arith.minimumf %135, %120 : vector<16x128xf32>
    %165 = arith.subf %164, %163 : vector<16x128xf32>
    %166 = math.exp %165 : vector<16x128xf32>
    %cst_60 = arith.constant 1.000000e+00 : f32
    %167 = vector.broadcast %cst_60 : f32 to vector<16x128xf32>
    %168 = arith.select %162, %166, %167 : vector<16x128xi1>, vector<16x128xf32>
    %169 = arith.mulf %129, %168 : vector<16x128xf32>
    %cst_61 = arith.constant 1.000000e+00 : f32
    %170 = vector.broadcast %cst_61 : f32 to vector<16x128xf32>
    %171 = arith.select %162, %170, %166 : vector<16x128xi1>, vector<16x128xf32>
    %172 = arith.addf %169, %171 : vector<16x128xf32>
    %173 = arith.maximumf %131, %135 : vector<16x128xf32>
    %174 = arith.select %162, %120, %173 : vector<16x128xi1>, vector<16x128xf32>
    %c0_62 = arith.constant 0 : index
    %c3_63 = arith.constant 3 : index
    %175 = arith.index_cast %9 : i32 to index
    %c0_64 = arith.constant 0 : index
    %176 = vector.load %arg5[%c0_62, %c3_63, %175, %c0_64] : memref<1x4x16x128xbf16, #tpu.memory_space<vmem>>, vector<1x1x16x128xbf16>
    %177 = vector.shape_cast %176 : vector<1x1x16x128xbf16> to vector<16x128xbf16>
    %178 = arith.extf %177 : vector<16x128xbf16> to vector<16x128xf32>
    %c0_65 = arith.constant 0 : index
    %c3_66 = arith.constant 3 : index
    %179 = arith.index_cast %9 : i32 to index
    %c0_67 = arith.constant 0 : index
    %180 = vector.load %arg7[%c0_65, %c3_66, %179, %c0_67] : memref<1x4x16x128xbf16, #tpu.memory_space<vmem>>, vector<1x1x16x128xbf16>
    %181 = vector.shape_cast %180 : vector<1x1x16x128xbf16> to vector<16x128xbf16>
    %182 = arith.extf %181 : vector<16x128xbf16> to vector<16x128xf32>
    %183 = arith.subf %182, %50 : vector<16x128xf32>
    %184 = math.exp %183 : vector<16x128xf32>
    %185 = arith.mulf %184, %61 : vector<16x128xf32>
    %c0_68 = arith.constant 0 : index
    %c3_69 = arith.constant 3 : index
    %186 = arith.index_cast %9 : i32 to index
    %c0_70 = arith.constant 0 : index
    %187 = vector.load %arg6[%c0_68, %c3_69, %186, %c0_70] : memref<1x4x16x128xbf16, #tpu.memory_space<vmem>>, vector<1x1x16x128xbf16>
    %188 = vector.shape_cast %187 : vector<1x1x16x128xbf16> to vector<16x128xbf16>
    %189 = arith.extf %188 : vector<16x128xbf16> to vector<16x128xf32>
    %190 = vector.broadcast %1 : f32 to vector<16x128xf32>
    %191 = arith.subf %189, %190 : vector<16x128xf32>
    %192 = vector.broadcast %4 : f32 to vector<16x128xf32>
    %193 = arith.mulf %191, %192 : vector<16x128xf32>
    %194 = arith.addf %185, %193 : vector<16x128xf32>
    %195 = arith.cmpf ogt, %194, %153 : vector<16x128xf32>
    %c3_i32 = arith.constant 3 : i32
    %196 = vector.broadcast %c3_i32 : i32 to vector<16x128xi32>
    %197 = arith.select %195, %196, %155 : vector<16x128xi1>, vector<16x128xi32>
    %198 = arith.select %195, %178, %156 : vector<16x128xi1>, vector<16x128xf32>
    %199 = arith.select %195, %178, %161 : vector<16x128xi1>, vector<16x128xf32>
    %200 = arith.cmpf ogt, %178, %163 : vector<16x128xf32>
    %201 = arith.maximumf %163, %178 : vector<16x128xf32>
    %202 = arith.minimumf %178, %163 : vector<16x128xf32>
    %203 = arith.subf %202, %201 : vector<16x128xf32>
    %204 = math.exp %203 : vector<16x128xf32>
    %cst_71 = arith.constant 1.000000e+00 : f32
    %205 = vector.broadcast %cst_71 : f32 to vector<16x128xf32>
    %206 = arith.select %200, %204, %205 : vector<16x128xi1>, vector<16x128xf32>
    %207 = arith.mulf %172, %206 : vector<16x128xf32>
    %cst_72 = arith.constant 1.000000e+00 : f32
    %208 = vector.broadcast %cst_72 : f32 to vector<16x128xf32>
    %209 = arith.select %200, %208, %204 : vector<16x128xi1>, vector<16x128xf32>
    %210 = arith.addf %207, %209 : vector<16x128xf32>
    %211 = arith.maximumf %174, %178 : vector<16x128xf32>
    %212 = arith.select %200, %163, %211 : vector<16x128xi1>, vector<16x128xf32>
    %213 = math.log %210 : vector<16x128xf32>
    %214 = arith.addf %201, %213 : vector<16x128xf32>
    %215 = tpu.reciprocal %210 {approx = true} : vector<16x128xf32> -> vector<16x128xf32>
    %216 = arith.subf %214, %198 : vector<16x128xf32>
    %217 = arith.subf %214, %199 : vector<16x128xf32>
    %218 = vector.broadcast %5 : f32 to vector<16x128xf32>
    %219 = arith.mulf %218, %217 : vector<16x128xf32>
    %220 = arith.subf %216, %219 : vector<16x128xf32>
    %c0_73 = arith.constant 0 : index
    %221 = arith.index_cast %9 : i32 to index
    %c0_74 = arith.constant 0 : index
    %222 = vector.load %arg8[%c0_73, %221, %c0_74] : memref<1x16x128xf32, #tpu.memory_space<vmem>>, vector<1x16x128xf32>
    %223 = vector.shape_cast %222 : vector<1x16x128xf32> to vector<16x128xf32>
    %224 = vector.shape_cast %220 : vector<16x128xf32> to vector<1x16x128xf32>
    tpu.vector_store %arg8[%c0_73, %221, %c0_74], %224 {strides = array<i32>} : memref<1x16x128xf32, #tpu.memory_space<vmem>>, vector<1x16x128xf32>,
    %225 = arith.subf %212, %201 : vector<16x128xf32>
    %226 = math.exp %225 : vector<16x128xf32>
    %cst_75 = arith.constant 1.000000e+00 : f32
    %227 = vector.broadcast %cst_75 : f32 to vector<16x128xf32>
    %228 = arith.subf %227, %226 : vector<16x128xf32>
    %229 = arith.mulf %228, %215 : vector<16x128xf32>
    %cst_76 = arith.constant 1.000000e+00 : f32
    %230 = vector.broadcast %cst_76 : f32 to vector<16x128xf32>
    %231 = arith.subf %230, %229 : vector<16x128xf32>
    %c0_77 = arith.constant 0 : index
    %232 = arith.index_cast %9 : i32 to index
    %c0_78 = arith.constant 0 : index
    %233 = vector.load %arg9[%c0_77, %232, %c0_78] : memref<1x16x128xf32, #tpu.memory_space<vmem>>, vector<1x16x128xf32>
    %234 = vector.shape_cast %233 : vector<1x16x128xf32> to vector<16x128xf32>
    %235 = vector.shape_cast %231 : vector<16x128xf32> to vector<1x16x128xf32>
    tpu.vector_store %arg9[%c0_77, %232, %c0_78], %235 {strides = array<i32>} : memref<1x16x128xf32, #tpu.memory_space<vmem>>, vector<1x16x128xf32>,
    %c0_79 = arith.constant 0 : index
    %236 = arith.index_cast %9 : i32 to index
    %c0_80 = arith.constant 0 : index
    %237 = vector.load %arg10[%c0_79, %236, %c0_80] : memref<1x16x128xi32, #tpu.memory_space<vmem>>, vector<1x16x128xi32>
    %238 = vector.shape_cast %237 : vector<1x16x128xi32> to vector<16x128xi32>
    %239 = vector.shape_cast %197 : vector<16x128xi32> to vector<1x16x128xi32>
    tpu.vector_store %arg10[%c0_79, %236, %c0_80], %239 {strides = array<i32>} : memref<1x16x128xi32, #tpu.memory_space<vmem>>, vector<1x16x128xi32>,
    %c1_i32_81 = arith.constant 1 : i32
    return
  }
  func.func @transform_0(%arg0: i32, %arg1: i32) -> i32 {
    %c0_i32 = arith.constant 0 : i32
    %c0_i32_0 = arith.constant 0 : i32
    return %c0_i32 : i32
  }
  func.func @transform_1(%arg0: i32, %arg1: i32) -> i32 {
    %c0_i32 = arith.constant 0 : i32
    %c0_i32_0 = arith.constant 0 : i32
    return %c0_i32 : i32
  }
  func.func @transform_2(%arg0: i32, %arg1: i32) -> i32 {
    %c0_i32 = arith.constant 0 : i32
    %c0_i32_0 = arith.constant 0 : i32
    return %c0_i32 : i32
  }
  func.func @transform_3(%arg0: i32, %arg1: i32) -> (i32, i32, i32, i32) {
    %c0_i32 = arith.constant 0 : i32
    %c0_i32_0 = arith.constant 0 : i32
    %c0_i32_1 = arith.constant 0 : i32
    return %arg0, %c0_i32, %arg1, %c0_i32_0 : i32, i32, i32, i32
  }
  func.func @transform_4(%arg0: i32, %arg1: i32) -> (i32, i32, i32, i32) {
    %c0_i32 = arith.constant 0 : i32
    %c0_i32_0 = arith.constant 0 : i32
    %c0_i32_1 = arith.constant 0 : i32
    return %arg0, %c0_i32, %arg1, %c0_i32_0 : i32, i32, i32, i32
  }
  func.func @transform_5(%arg0: i32, %arg1: i32) -> (i32, i32, i32, i32) {
    %c0_i32 = arith.constant 0 : i32
    %c0_i32_0 = arith.constant 0 : i32
    %c0_i32_1 = arith.constant 0 : i32
    return %arg0, %c0_i32, %arg1, %c0_i32_0 : i32, i32, i32, i32
  }
  func.func @transform_6(%arg0: i32, %arg1: i32) -> (i32, i32, i32) {
    %c0_i32 = arith.constant 0 : i32
    %c0_i32_0 = arith.constant 0 : i32
    return %arg0, %arg1, %c0_i32 : i32, i32, i32
  }
  func.func @transform_7(%arg0: i32, %arg1: i32) -> (i32, i32, i32) {
    %c0_i32 = arith.constant 0 : i32
    %c0_i32_0 = arith.constant 0 : i32
    return %arg0, %arg1, %c0_i32 : i32, i32, i32
  }
  func.func @transform_8(%arg0: i32, %arg1: i32) -> (i32, i32, i32) {
    %c0_i32 = arith.constant 0 : i32
    %c0_i32_0 = arith.constant 0 : i32
    return %arg0, %arg1, %c0_i32 : i32, i32, i32
  }
}

</mosaic_0001>

<llo_original>
// kernel: tpu_custom_call.1
$region0: #{tpu_custom_call.1}
  #allocation0 [shape = 'u32[]', space=smem, size = 0x4, offset = 0x4, fixed_abs, tag = 'smem constant byte address 0x4 - core index']
  #allocation1 [shape = 'u32[144,128]{1,0:T(1,128)}', space=vmem, size = 0x12000, scoped, tag = 'internal scratch']
  #allocation2 [shape = 'f32[1]{0:T(128)S(6)}', space=smem, size = 0x200, scoped, tag = 'scoped memory for tpu_custom_call.1']
  %s0 = inlined_call_operand.vmem [shape: f32[2], index: 0, kind: input, shape index: {}]
  %s1 = inlined_call_operand.vmem [shape: f32[2], index: 1, kind: input, shape index: {}]
  %s2 = inlined_call_operand.<no memory space> [shape: f32[1], index: 2, kind: input, shape index: {}]
  %s3 = inlined_call_operand.hbm [shape: bf16[2,4,16,128], index: 3, kind: input, shape index: {}]
  %s4 = inlined_call_operand.hbm [shape: bf16[2,4,16,128], index: 4, kind: input, shape index: {}]
  %s5 = inlined_call_operand.hbm [shape: bf16[2,4,16,128], index: 5, kind: input, shape index: {}]
  %s6 = inlined_call_operand.hbm [shape: f32[2,16,128], index: 6, kind: output, shape index: {0}]
  %s7 = inlined_call_operand.hbm [shape: f32[2,16,128], index: 7, kind: output, shape index: {1}]
  %s8 = inlined_call_operand.hbm [shape: s32[2,16,128], index: 8, kind: output, shape index: {2}]
  %9 = xla_tuple %s6, %s7, %s8
  %s10 = sld [smem:[#allocation0]]
  $region93: #{tpu_custom_call.1} parent=0
    _
  %s12 = ssub.s32 1, %s10
  %s13 = scalar_select 0, %s12, %s10
  %14 = sst [smem:[#allocation2]] %s2
  $region1: #{tpu_custom_call.1} parent=0
    #allocation3 [shape = 'u8[512]{0}', space=smem, size = 0x200, scoped, tag = 'input window, operand 0, single buffered']
    #allocation4 [shape = 's32[2]{0}', space=sflag, size = 0x8, scoped, tag = 'scoped memory for tpu_custom_call.1']
    #allocation5 [shape = 's32[2]{0}', space=sflag, size = 0x8, scoped, tag = 'scoped memory for tpu_custom_call.1']
    #allocation6 [shape = 's32[2]{0}', space=sflag, size = 0x8, scoped, tag = 'scoped memory for tpu_custom_call.1']
    #allocation7 [shape = 'u8[512]{0}', space=smem, size = 0x200, scoped, tag = 'input window, operand 1, single buffered']
    #allocation8 [shape = 's32[1]{0}', space=sflag, size = 0x4, scoped, tag = 'scoped memory for tpu_custom_call.1']
    #allocation9 [shape = 'u8[32768]{0}', space=vmem, size = 0x8000, scoped, tag = 'input window, operand 3']
    #allocation10 [shape = 'u8[32768]{0}', space=vmem, size = 0x8000, scoped, tag = 'input window, operand 4']
    #allocation11 [shape = 's32[2]{0}', space=sflag, size = 0x8, scoped, tag = 'scoped memory for tpu_custom_call.1']
    #allocation12 [shape = 'u8[32768]{0}', space=vmem, size = 0x8000, scoped, tag = 'input window, operand 5']
    #allocation13 [shape = 'u8[16384]{0}', space=vmem, size = 0x4000, scoped, tag = 'output window, operand 0']
    #allocation14 [shape = 'u8[16384]{0}', space=vmem, size = 0x4000, scoped, tag = 'output window, operand 1']
    #allocation15 [shape = 's32[2]{0}', space=sflag, size = 0x8, scoped, tag = 'scoped memory for tpu_custom_call.1']
    #allocation16 [shape = 'u8[16384]{0}', space=vmem, size = 0x4000, scoped, tag = 'output window, operand 2']
    %15 = vsyncpa [#allocation6], 0
    %16 = vsyncpa [#allocation8], 0
    %17 = vsyncpa [#allocation4], 0
    %s18 = scalar_lea.sflag [#allocation4], 1
    %19 = vsyncpa %s18, 0
    %20 = vsyncpa [#allocation11], 0
    %s21 = scalar_lea.sflag [#allocation11], 1
    %22 = vsyncpa %s21, 0
    %23 = vsyncpa [#allocation5], 0
    %s24 = scalar_lea.sflag [#allocation5], 1
    %25 = vsyncpa %s24, 0
    %26 = vsyncpa [#allocation15], 0
    %s27 = scalar_lea.sflag [#allocation15], 1
    %28 = vsyncpa %s27, 0
    loop: start=0, step=1, limit=4
    $region2: #{tpu_custom_call.1} parent=1 // loop_pre_header
      _
    $region3: #{tpu_custom_call.1} parent=1 // loop_header
      %s30 = sphi 0, %s34
      %p31 = scmp.ge.s32.totalorder %s30, 4
      %s37 = sphi 0, %s49
      %s38 = sphi 0, %s45
      %s39 = sphi 0, %s37
      %s40 = sphi 0, %s38
      %s41 = sphi 0, %s39
      %s42 = sphi 0, %s40
      %s50 = sphi 0, %s50
      %s52 = sphi 0, %s50
      %s53 = sphi 0, %s52
      %s67 = sphi 0, %s53
      %s71 = sphi 0, %s71
      %s73 = sphi 0, %s71
      %s74 = sphi 0, %s73
      %s88 = sphi 0, %s74
      %s92 = sphi 0, %s92
      %s94 = sphi 0, %s92
      %s95 = sphi 0, %s94
      %s109 = sphi 0, %s95
      %s117 = sphi 0, %s119
      %s120 = sphi 0, %s117
      %s121 = sphi 0, %s120
      %s137 = sphi 0, %s121
      %s145 = sphi 0, %s147
      %s148 = sphi 0, %s145
      %s149 = sphi 0, %s148
      %s165 = sphi 0, %s149
      %s173 = sphi 0, %s175
      %s176 = sphi 0, %s173
      %s177 = sphi 0, %s176
      %s193 = sphi 0, %s177
      %s201 = sphi 0, %s203
      %s204 = sphi 0, %s201
      %s205 = sphi 0, %s204
      %s221 = sphi 0, %s205
      %s229 = sphi 0, %s231
      %s232 = sphi 0, %s229
      %s233 = sphi 0, %s232
      %s249 = sphi 0, %s233
      %s257 = sphi 0, %s259
      %s260 = sphi 0, %s257
      %s261 = sphi 0, %s260
      %s277 = sphi 0, %s261
    $region4: #{tpu_custom_call.1} parent=1 // loop_header_branch
      %33 = sbr.rel (%p31) target = $region8
    $region5: #{tpu_custom_call.1} parent=1 // loop_body
      %s35 = ssub.s32 %s30, 1
      %s36 = ssub.s32 %s30, 2
      %s43 = sadd.s32 1, %s38
      %p44 = scmp.ge.s32.totalorder %s43, 1
      %s45 = scalar_select %p44, 0, %s43
      %s46 = sadd.s32 1, %s37
      %s47 = scalar_select %p44, %s46, %s37
      %p48 = scmp.ge.s32.totalorder %s47, 2
      %s49 = scalar_select %p48, 0, %s47
      %s51 = sadd.s32 %s50, 1
      %p54 = scmp.eq.s32.totalorder %s30, 1
      %p55 = scmp.ne.s32.totalorder %s50, %s52
      %p56 = scmp.eq.s32.totalorder %s30, 0
      %p57 = por %p55, %p56
      %p58 = scmp.ne.s32.totalorder %s50, %s52
      %p59 = scmp.eq.s32.totalorder %s35, 1
      %p60 = por %p58, %p59
      %p61 = scmp.ne.s32.totalorder %s52, %s53
      %p62 = scmp.eq.s32.totalorder %s35, 0
      %p63 = por %p61, %p62
      %p64 = scmp.ne.s32.totalorder %s52, %s53
      %p65 = scmp.eq.s32.totalorder %s36, 1
      %p66 = por %p64, %p65
      %p68 = scmp.ne.s32.totalorder %s53, %s67
      %p69 = scmp.eq.s32.totalorder %s36, 0
      %p70 = por %p68, %p69
      %s72 = sadd.s32 %s71, 1
      %p75 = scmp.eq.s32.totalorder %s30, 1
      %p76 = scmp.ne.s32.totalorder %s71, %s73
      %p77 = scmp.eq.s32.totalorder %s30, 0
      %p78 = por %p76, %p77
      %p79 = scmp.ne.s32.totalorder %s71, %s73
      %p80 = scmp.eq.s32.totalorder %s35, 1
      %p81 = por %p79, %p80
      %p82 = scmp.ne.s32.totalorder %s73, %s74
      %p83 = scmp.eq.s32.totalorder %s35, 0
      %p84 = por %p82, %p83
      %p85 = scmp.ne.s32.totalorder %s73, %s74
      %p86 = scmp.eq.s32.totalorder %s36, 1
      %p87 = por %p85, %p86
      %p89 = scmp.ne.s32.totalorder %s74, %s88
      %p90 = scmp.eq.s32.totalorder %s36, 0
      %p91 = por %p89, %p90
      %s93 = sadd.s32 %s92, 1
      %p96 = scmp.eq.s32.totalorder %s30, 1
      %p97 = scmp.ne.s32.totalorder %s92, %s94
      %p98 = scmp.eq.s32.totalorder %s30, 0
      %p99 = por %p97, %p98
      %p100 = scmp.ne.s32.totalorder %s92, %s94
      %p101 = scmp.eq.s32.totalorder %s35, 1
      %p102 = por %p100, %p101
      %p103 = scmp.ne.s32.totalorder %s94, %s95
      %p104 = scmp.eq.s32.totalorder %s35, 0
      %p105 = por %p103, %p104
      %p106 = scmp.ne.s32.totalorder %s94, %s95
      %p107 = scmp.eq.s32.totalorder %s36, 1
      %p108 = por %p106, %p107
      %p110 = scmp.ne.s32.totalorder %s95, %s109
      %p111 = scmp.eq.s32.totalorder %s36, 0
      %p112 = por %p110, %p111
      %s113 = ssub.s32 %s37, %s49
      %s114 = ssub.s32 %s38, %s45
      %s115 = sor.u32 %s113, %s114
      %p116 = scmp.eq.s32.totalorder %s115, 0
      %s118 = sadd.s32 %s117, 1
      %s119 = scalar_select %p116, %s117, %s118
      %p122 = pneg %p116
      %p123 = scmp.eq.s32.totalorder %s30, 1
      %p124 = por %p122, %p123
      %p125 = scmp.ne.s32.totalorder %s117, %s120
      %p126 = scmp.eq.s32.totalorder %s30, 0
      %p127 = por %p125, %p126
      %p128 = scmp.ne.s32.totalorder %s117, %s120
      %p129 = scmp.eq.s32.totalorder %s35, 1
      %p130 = por %p128, %p129
      %p131 = scmp.ne.s32.totalorder %s120, %s121
      %p132 = scmp.eq.s32.totalorder %s35, 0
      %p133 = por %p131, %p132
      %p134 = scmp.ne.s32.totalorder %s120, %s121
      %p135 = scmp.eq.s32.totalorder %s36, 1
      %p136 = por %p134, %p135
      %p138 = scmp.ne.s32.totalorder %s121, %s137
      %p139 = scmp.eq.s32.totalorder %s36, 0
      %p140 = por %p138, %p139
      %s141 = ssub.s32 %s37, %s49
      %s142 = ssub.s32 %s38, %s45
      %s143 = sor.u32 %s141, %s142
      %p144 = scmp.eq.s32.totalorder %s143, 0
      %s146 = sadd.s32 %s145, 1
      %s147 = scalar_select %p144, %s145, %s146
      %p150 = pneg %p144
      %p151 = scmp.eq.s32.totalorder %s30, 1
      %p152 = por %p150, %p151
      %p153 = scmp.ne.s32.totalorder %s145, %s148
      %p154 = scmp.eq.s32.totalorder %s30, 0
      %p155 = por %p153, %p154
      %p156 = scmp.ne.s32.totalorder %s145, %s148
      %p157 = scmp.eq.s32.totalorder %s35, 1
      %p158 = por %p156, %p157
      %p159 = scmp.ne.s32.totalorder %s148, %s149
      %p160 = scmp.eq.s32.totalorder %s35, 0
      %p161 = por %p159, %p160
      %p162 = scmp.ne.s32.totalorder %s148, %s149
      %p163 = scmp.eq.s32.totalorder %s36, 1
      %p164 = por %p162, %p163
      %p166 = scmp.ne.s32.totalorder %s149, %s165
      %p167 = scmp.eq.s32.totalorder %s36, 0
      %p168 = por %p166, %p167
      %s169 = ssub.s32 %s37, %s49
      %s170 = ssub.s32 %s38, %s45
      %s171 = sor.u32 %s169, %s170
      %p172 = scmp.eq.s32.totalorder %s171, 0
      %s174 = sadd.s32 %s173, 1
      %s175 = scalar_select %p172, %s173, %s174
      %p178 = pneg %p172
      %p179 = scmp.eq.s32.totalorder %s30, 1
      %p180 = por %p178, %p179
      %p181 = scmp.ne.s32.totalorder %s173, %s176
      %p182 = scmp.eq.s32.totalorder %s30, 0
      %p183 = por %p181, %p182
      %p184 = scmp.ne.s32.totalorder %s173, %s176
      %p185 = scmp.eq.s32.totalorder %s35, 1
      %p186 = por %p184, %p185
      %p187 = scmp.ne.s32.totalorder %s176, %s177
      %p188 = scmp.eq.s32.totalorder %s35, 0
      %p189 = por %p187, %p188
      %p190 = scmp.ne.s32.totalorder %s176, %s177
      %p191 = scmp.eq.s32.totalorder %s36, 1
      %p192 = por %p190, %p191
      %p194 = scmp.ne.s32.totalorder %s177, %s193
      %p195 = scmp.eq.s32.totalorder %s36, 0
      %p196 = por %p194, %p195
      %s197 = ssub.s32 %s37, %s49
      %s198 = ssub.s32 %s38, %s45
      %s199 = sor.u32 %s197, %s198
      %p200 = scmp.eq.s32.totalorder %s199, 0
      %s202 = sadd.s32 %s201, 1
      %s203 = scalar_select %p200, %s201, %s202
      %p206 = pneg %p200
      %p207 = scmp.eq.s32.totalorder %s30, 1
      %p208 = por %p206, %p207
      %p209 = scmp.ne.s32.totalorder %s201, %s204
      %p210 = scmp.eq.s32.totalorder %s30, 0
      %p211 = por %p209, %p210
      %p212 = scmp.ne.s32.totalorder %s201, %s204
      %p213 = scmp.eq.s32.totalorder %s35, 1
      %p214 = por %p212, %p213
      %p215 = scmp.ne.s32.totalorder %s204, %s205
      %p216 = scmp.eq.s32.totalorder %s35, 0
      %p217 = por %p215, %p216
      %p218 = scmp.ne.s32.totalorder %s204, %s205
      %p219 = scmp.eq.s32.totalorder %s36, 1
      %p220 = por %p218, %p219
      %p222 = scmp.ne.s32.totalorder %s205, %s221
      %p223 = scmp.eq.s32.totalorder %s36, 0
      %p224 = por %p222, %p223
      %s225 = ssub.s32 %s37, %s49
      %s226 = ssub.s32 %s38, %s45
      %s227 = sor.u32 %s225, %s226
      %p228 = scmp.eq.s32.totalorder %s227, 0
      %s230 = sadd.s32 %s229, 1
      %s231 = scalar_select %p228, %s229, %s230
      %p234 = pneg %p228
      %p235 = scmp.eq.s32.totalorder %s30, 1
      %p236 = por %p234, %p235
      %p237 = scmp.ne.s32.totalorder %s229, %s232
      %p238 = scmp.eq.s32.totalorder %s30, 0
      %p239 = por %p237, %p238
      %p240 = scmp.ne.s32.totalorder %s229, %s232
      %p241 = scmp.eq.s32.totalorder %s35, 1
      %p242 = por %p240, %p241
      %p243 = scmp.ne.s32.totalorder %s232, %s233
      %p244 = scmp.eq.s32.totalorder %s35, 0
      %p245 = por %p243, %p244
      %p246 = scmp.ne.s32.totalorder %s232, %s233
      %p247 = scmp.eq.s32.totalorder %s36, 1
      %p248 = por %p246, %p247
      %p250 = scmp.ne.s32.totalorder %s233, %s249
      %p251 = scmp.eq.s32.totalorder %s36, 0
      %p252 = por %p250, %p251
      %s253 = ssub.s32 %s37, %s49
      %s254 = ssub.s32 %s38, %s45
      %s255 = sor.u32 %s253, %s254
      %p256 = scmp.eq.s32.totalorder %s255, 0
      %s258 = sadd.s32 %s257, 1
      %s259 = scalar_select %p256, %s257, %s258
      %p262 = pneg %p256
      %p263 = scmp.eq.s32.totalorder %s30, 1
      %p264 = por %p262, %p263
      %p265 = scmp.ne.s32.totalorder %s257, %s260
      %p266 = scmp.eq.s32.totalorder %s30, 0
      %p267 = por %p265, %p266
      %p268 = scmp.ne.s32.totalorder %s257, %s260
      %p269 = scmp.eq.s32.totalorder %s35, 1
      %p270 = por %p268, %p269
      %p271 = scmp.ne.s32.totalorder %s260, %s261
      %p272 = scmp.eq.s32.totalorder %s35, 0
      %p273 = por %p271, %p272
      %p274 = scmp.ne.s32.totalorder %s260, %s261
      %p275 = scmp.eq.s32.totalorder %s36, 1
      %p276 = por %p274, %p275
      %p278 = scmp.ne.s32.totalorder %s261, %s277
      %p279 = scmp.eq.s32.totalorder %s36, 0
      %p280 = por %p278, %p279
      %p281 = scmp.le.s32.totalorder 1, %s30
      %p282 = scmp.lt.s32.totalorder %s30, 3
      %p283 = pnand %p281, %p282
      %p284 = pneg %p283
      // Predicated region
      $region9: #{tpu_custom_call.1} parent=5 // pred_check
        _
      $region10: #{tpu_custom_call.1} parent=5 // pred_check_branch
        %286 = sbr.rel (%p283) target = $region12
      $region11: #{tpu_custom_call.1} parent=5 // pred_region
        %s287 = ssub.s32 %s30, 1
        // Predicated region
        $region13: #{tpu_custom_call.1} parent=11 // pred_check
          %p288 = pneg %p63
        $region14: #{tpu_custom_call.1} parent=11 // pred_check_branch
          %290 = sbr.rel (%p288) target = $region16
        $region15: #{tpu_custom_call.1} parent=11 // pred_region
          %s292 = ssub.s32 16, 16
          %293 = vsyncadd [#allocation6], %s292
          %s295 = sshll.u32 %s0, 4
          %s296 = int_to_ptr.vmem [resolvable:$true] %s295
          %298 = dma.vmem_to_smem %s296, 16, [#allocation3], [#allocation6]
        $region16: #{tpu_custom_call.1} parent=11 // pred_fallthru
          _
        // Predicated region
        $region17: #{tpu_custom_call.1} parent=11 // pred_check
          %p299 = pneg %p84
        $region18: #{tpu_custom_call.1} parent=11 // pred_check_branch
          %301 = sbr.rel (%p299) target = $region20
        $region19: #{tpu_custom_call.1} parent=11 // pred_region
          %s303 = ssub.s32 16, 16
          %304 = vsyncadd [#allocation8], %s303
          %s306 = sshll.u32 %s1, 4
          %s307 = int_to_ptr.vmem [resolvable:$true] %s306
          %309 = dma.vmem_to_smem %s307, 16, [#allocation7], [#allocation8]
        $region20: #{tpu_custom_call.1} parent=11 // pred_fallthru
          _
        // Predicated region
        $region21: #{tpu_custom_call.1} parent=11 // pred_check
          %p310 = pneg %p105
        $region22: #{tpu_custom_call.1} parent=11 // pred_check_branch
          %312 = sbr.rel (%p310) target = $region24
        $region23: #{tpu_custom_call.1} parent=11 // pred_region
          _
        $region24: #{tpu_custom_call.1} parent=11 // pred_fallthru
          _
      $region12: #{tpu_custom_call.1} parent=5 // pred_fallthru
        _
      %p313 = scmp.lt.s32.totalorder %s30, 2
      // Predicated region
      $region25: #{tpu_custom_call.1} parent=5 // pred_check
        %p314 = pneg %p313
      $region26: #{tpu_custom_call.1} parent=5 // pred_check_branch
        %316 = sbr.rel (%p314) target = $region28
      $region27: #{tpu_custom_call.1} parent=5 // pred_region
        // Predicated region
        $region29: #{tpu_custom_call.1} parent=27 // pred_check
          %p317 = pneg %p127
        $region30: #{tpu_custom_call.1} parent=27 // pred_check_branch
          %319 = sbr.rel (%p317) target = $region32
        $region31: #{tpu_custom_call.1} parent=27 // pred_region
          %s320 = sand.u32 %s117, 1
          %s321 = scalar_lea.sflag [#allocation4], %s320
          %s322 = sand.u32 %s117, 1
          %s323 = smul.addr %s322, 32
          %s324 = scalar_lea.vmem [#allocation9], %s323
          %s325 = smul.u32 2, %s38
          %s327 = ssub.s32 512, 512
          %328 = vsyncadd %s321, %s327
          %s329 = smul.addr %s37, 8
          %s330 = sadd.s32 %s325, %s329
          %s331 = smul.addr %s330, 64
          %s332 = scalar_lea.hbm %s3, %s331
          %s333 = sshll.u32 %s324, 4
          %s334 = int_to_ptr.vmem [resolvable:$true] %s333
          %339 = dma.hbm_to_vmem [thread:$0]  %s332, 512, %s334, %s321, 64, 64, 4
        $region32: #{tpu_custom_call.1} parent=27 // pred_fallthru
          _
        // Predicated region
        $region33: #{tpu_custom_call.1} parent=27 // pred_check
          %p340 = pneg %p155
        $region34: #{tpu_custom_call.1} parent=27 // pred_check_branch
          %342 = sbr.rel (%p340) target = $region36
        $region35: #{tpu_custom_call.1} parent=27 // pred_region
          %s343 = sand.u32 %s30, 1
          %s344 = scalar_lea.sflag [#allocation11], %s343
          %s345 = sand.u32 %s145, 1
          %s346 = smul.addr %s345, 32
          %s347 = scalar_lea.vmem [#allocation10], %s346
          %s348 = smul.u32 2, %s38
          %s350 = ssub.s32 512, 512
          %351 = vsyncadd %s344, %s350
          %s352 = smul.addr %s37, 8
          %s353 = sadd.s32 %s348, %s352
          %s354 = smul.addr %s353, 64
          %s355 = scalar_lea.hbm %s4, %s354
          %s356 = sshll.u32 %s347, 4
          %s357 = int_to_ptr.vmem [resolvable:$true] %s356
          %362 = dma.hbm_to_vmem [thread:$0]  %s355, 512, %s357, %s344, 64, 64, 4
        $region36: #{tpu_custom_call.1} parent=27 // pred_fallthru
          _
        // Predicated region
        $region37: #{tpu_custom_call.1} parent=27 // pred_check
          %p363 = pneg %p183
        $region38: #{tpu_custom_call.1} parent=27 // pred_check_branch
          %365 = sbr.rel (%p363) target = $region40
        $region39: #{tpu_custom_call.1} parent=27 // pred_region
          %s366 = sand.u32 %s30, 1
          %s367 = scalar_lea.sflag [#allocation11], %s366
          %s368 = sand.u32 %s173, 1
          %s369 = smul.addr %s368, 32
          %s370 = scalar_lea.vmem [#allocation12], %s369
          %s371 = smul.u32 2, %s38
          %s373 = ssub.s32 512, 512
          %374 = vsyncadd %s367, %s373
          %s375 = smul.addr %s37, 8
          %s376 = sadd.s32 %s371, %s375
          %s377 = smul.addr %s376, 64
          %s378 = scalar_lea.hbm %s5, %s377
          %s379 = sshll.u32 %s370, 4
          %s380 = int_to_ptr.vmem [resolvable:$true] %s379
          %385 = dma.hbm_to_vmem [thread:$0]  %s378, 512, %s380, %s367, 64, 64, 4
        $region40: #{tpu_custom_call.1} parent=27 // pred_fallthru
          _
      $region28: #{tpu_custom_call.1} parent=5 // pred_fallthru
        _
      %p386 = scmp.le.s32.totalorder 1, %s30
      %p387 = scmp.lt.s32.totalorder %s30, 3
      %p388 = pnand %p386, %p387
      %p389 = pneg %p388
      // Predicated region
      $region41: #{tpu_custom_call.1} parent=5 // pred_check
        _
      $region42: #{tpu_custom_call.1} parent=5 // pred_check_branch
        %391 = sbr.rel (%p388) target = $region44
      $region43: #{tpu_custom_call.1} parent=5 // pred_region
        %s392 = ssub.s32 %s30, 1
        // Predicated region
        $region45: #{tpu_custom_call.1} parent=43 // pred_check
          %p393 = pneg %p63
        $region46: #{tpu_custom_call.1} parent=43 // pred_check_branch
          %395 = sbr.rel (%p393) target = $region48
        $region47: #{tpu_custom_call.1} parent=43 // pred_region
          %396 = dma.done [#allocation6], 16
        $region48: #{tpu_custom_call.1} parent=43 // pred_fallthru
          _
        // Predicated region
        $region49: #{tpu_custom_call.1} parent=43 // pred_check
          %p397 = pneg %p84
        $region50: #{tpu_custom_call.1} parent=43 // pred_check_branch
          %399 = sbr.rel (%p397) target = $region52
        $region51: #{tpu_custom_call.1} parent=43 // pred_region
          %400 = dma.done [#allocation8], 16
        $region52: #{tpu_custom_call.1} parent=43 // pred_fallthru
          _
        %s401 = sand.u32 %s120, 1
        %s402 = scalar_lea.sflag [#allocation4], %s401
        %s403 = sand.u32 %s120, 1
        %s404 = smul.addr %s403, 32
        %s405 = scalar_lea.vmem [#allocation9], %s404
        // Predicated region
        $region53: #{tpu_custom_call.1} parent=43 // pred_check
          %p406 = pneg %p133
        $region54: #{tpu_custom_call.1} parent=43 // pred_check_branch
          %408 = sbr.rel (%p406) target = $region56
        $region55: #{tpu_custom_call.1} parent=43 // pred_region
          %409 = dma.done %s402, 512
        $region56: #{tpu_custom_call.1} parent=43 // pred_fallthru
          _
        %s410 = sand.u32 %s35, 1
        %s411 = scalar_lea.sflag [#allocation11], %s410
        %s412 = sand.u32 %s148, 1
        %s413 = smul.addr %s412, 32
        %s414 = scalar_lea.vmem [#allocation10], %s413
        // Predicated region
        $region57: #{tpu_custom_call.1} parent=43 // pred_check
          %p415 = pneg %p161
        $region58: #{tpu_custom_call.1} parent=43 // pred_check_branch
          %417 = sbr.rel (%p415) target = $region60
        $region59: #{tpu_custom_call.1} parent=43 // pred_region
          %418 = dma.done %s411, 512
        $region60: #{tpu_custom_call.1} parent=43 // pred_fallthru
          _
        %s419 = sand.u32 %s35, 1
        %s420 = scalar_lea.sflag [#allocation11], %s419
        %s421 = sand.u32 %s176, 1
        %s422 = smul.addr %s421, 32
        %s423 = scalar_lea.vmem [#allocation12], %s422
        // Predicated region
        $region61: #{tpu_custom_call.1} parent=43 // pred_check
          %p424 = pneg %p189
        $region62: #{tpu_custom_call.1} parent=43 // pred_check_branch
          %426 = sbr.rel (%p424) target = $region64
        $region63: #{tpu_custom_call.1} parent=43 // pred_region
          %427 = dma.done %s420, 512
        $region64: #{tpu_custom_call.1} parent=43 // pred_fallthru
          _
        %428 = sfence
        %p429 = pneg %p63
        %p430 = pneg %p60
        %p431 = pneg %p84
        %p432 = pneg %p81
        %p433 = pneg %p105
        %p434 = pneg %p102
        %s435 = sand.u32 %s120, 1
        %s436 = scalar_lea.sflag [#allocation4], %s435
        %s437 = sand.u32 %s120, 1
        %s438 = smul.addr %s437, 32
        %s439 = scalar_lea.vmem [#allocation9], %s438
        %p440 = pneg %p133
        %p441 = pneg %p130
        %s442 = sand.u32 %s35, 1
        %s443 = scalar_lea.sflag [#allocation11], %s442
        %s444 = sand.u32 %s148, 1
        %s445 = smul.addr %s444, 32
        %s446 = scalar_lea.vmem [#allocation10], %s445
        %p447 = pneg %p161
        %p448 = pneg %p158
        %s449 = sand.u32 %s35, 1
        %s450 = scalar_lea.sflag [#allocation11], %s449
        %s451 = sand.u32 %s176, 1
        %s452 = smul.addr %s451, 32
        %s453 = scalar_lea.vmem [#allocation12], %s452
        %p454 = pneg %p189
        %p455 = pneg %p186
        %p456 = pneg %p217
        %p457 = pneg %p214
        %s458 = sand.u32 %s204, 1
        %s459 = scalar_lea.sflag [#allocation5], %s458
        %s460 = sand.u32 %s204, 1
        %s461 = smul.addr %s460, 16
        %s462 = scalar_lea.vmem [#allocation13], %s461
        %p463 = pneg %p245
        %p464 = pneg %p242
        %s465 = sand.u32 %s35, 1
        %s466 = scalar_lea.sflag [#allocation15], %s465
        %s467 = sand.u32 %s232, 1
        %s468 = smul.addr %s467, 16
        %s469 = scalar_lea.vmem [#allocation14], %s468
        %p470 = pneg %p273
        %p471 = pneg %p270
        %s472 = sand.u32 %s35, 1
        %s473 = scalar_lea.sflag [#allocation15], %s472
        %s474 = sand.u32 %s260, 1
        %s475 = smul.addr %s474, 16
        %s476 = scalar_lea.vmem [#allocation16], %s475
        %s477 = smul.u32 2, %s40
        %s478 = smul.u32 2, %s40
        %s479 = smul.u32 2, %s40
        %s480 = smul.u32 2, %s40
        %s481 = smul.u32 2, %s40
        %s482 = smul.u32 2, %s40
        %s483 = sld [smem:[#allocation3 + %s39]]
        %s484 = sld [smem:[#allocation7 + %s39]]
        %s485 = smul.f32 %s484, 0.5
        %s486 = sld [smem:[#allocation2]]
        %v487 = vld [vmem:[%s423] sm:$0xf]
        %v488 = vld [vmem:[%s423 + $0x4] sm:$0xf]
        %v489 = vunpack.c.l.bf16 %v487
        %v490 = vunpack.c.l.bf16 %v488
        %s491 = sadd.s32 0, 2
        %s492 = smul.addr %s491, 4
        %s493 = scalar_lea.vmem %s423, %s492 [#allocation12]
        %v494 = vld [vmem:[%s493] sm:$0xf]
        %v495 = vld [vmem:[%s493 + $0x4] sm:$0xf]
        %v496 = vunpack.c.l.bf16 %v494
        %v497 = vunpack.c.l.bf16 %v495
        %vm498 = vcmp.gt.f32.partialorder %v496, %v489
        %vm499 = vcmp.gt.f32.partialorder %v497, %v490
        %v500 = vmax.f32 %v489, %v496
        %v501 = vmax.f32 %v490, %v497
        %v502 = vmin.f32 %v496, %v489
        %v503 = vmin.f32 %v497, %v490
        %v504 = vsub.f32 %v502, %v500
        %v505 = vsub.f32 %v503, %v501
        %v506 = vmul.f32 %v504, 1.442695
        %v507 = vpow.pop %v506
        %v508 = vmul.f32 %v505, 1.442695
        %v509 = vpow.pop %v508
        %v510 = vsel %vm498, %v507, 1.0
        %v511 = vsel %vm499, %v509, 1.0
        %v512 = vsel %vm498, 1.0, %v507
        %v513 = vsel %vm499, 1.0, %v509
        %v514 = vadd.f32 %v510, %v512
        %v515 = vadd.f32 %v511, %v513
        %s516 = sadd.s32 0, 4
        %s517 = smul.addr %s516, 4
        %s518 = scalar_lea.vmem %s423, %s517 [#allocation12]
        %v519 = vld [vmem:[%s518] sm:$0xf]
        %v520 = vld [vmem:[%s518 + $0x4] sm:$0xf]
        %v521 = vunpack.c.l.bf16 %v519
        %v522 = vunpack.c.l.bf16 %v520
        %vm523 = vcmp.gt.f32.partialorder %v521, %v500
        %vm524 = vcmp.gt.f32.partialorder %v522, %v501
        %v525 = vmax.f32 %v500, %v521
        %v526 = vmax.f32 %v501, %v522
        %v527 = vmin.f32 %v521, %v500
        %v528 = vmin.f32 %v522, %v501
        %v529 = vsub.f32 %v527, %v525
        %v530 = vsub.f32 %v528, %v526
        %v531 = vmul.f32 %v529, 1.442695
        %v532 = vpow.pop %v531
        %v533 = vmul.f32 %v530, 1.442695
        %v534 = vpow.pop %v533
        %v535 = vsel %vm523, %v532, 1.0
        %v536 = vsel %vm524, %v534, 1.0
        %v537 = vmul.f32 %v514, %v535
        %v538 = vmul.f32 %v515, %v536
        %v539 = vsel %vm523, 1.0, %v532
        %v540 = vsel %vm524, 1.0, %v534
        %v541 = vadd.f32 %v537, %v539
        %v542 = vadd.f32 %v538, %v540
        %s543 = sadd.s32 0, 6
        %s544 = smul.addr %s543, 4
        %s545 = scalar_lea.vmem %s423, %s544 [#allocation12]
        %v546 = vld [vmem:[%s545] sm:$0xf]
        %v547 = vld [vmem:[%s545 + $0x4] sm:$0xf]
        %v548 = vunpack.c.l.bf16 %v546
        %v549 = vunpack.c.l.bf16 %v547
        %vm550 = vcmp.gt.f32.partialorder %v548, %v525
        %vm551 = vcmp.gt.f32.partialorder %v549, %v526
        %v552 = vmax.f32 %v525, %v548
        %v553 = vmax.f32 %v526, %v549
        %v554 = vmin.f32 %v548, %v525
        %v555 = vmin.f32 %v549, %v526
        %v556 = vsub.f32 %v554, %v552
        %v557 = vsub.f32 %v555, %v553
        %v558 = vmul.f32 %v556, 1.442695
        %v559 = vpow.pop %v558
        %v560 = vmul.f32 %v557, 1.442695
        %v561 = vpow.pop %v560
        %v562 = vsel %vm550, %v559, 1.0
        %v563 = vsel %vm551, %v561, 1.0
        %v564 = vmul.f32 %v541, %v562
        %v565 = vmul.f32 %v542, %v563
        %v566 = vsel %vm550, 1.0, %v559
        %v567 = vsel %vm551, 1.0, %v561
        %v568 = vadd.f32 %v564, %v566
        %v569 = vadd.f32 %v565, %v567
        %v570 = vrcp.pop %v568
        %v571 = vmul.f32 0.5, %v570
        %v572 = vrcp.pop %v569
        %v573 = vmul.f32 0.5, %v572
        %v574 = vld [vmem:[%s405] sm:$0xf]
        %v575 = vld [vmem:[%s405 + $0x4] sm:$0xf]
        %v576 = vunpack.c.l.bf16 %v574
        %v577 = vunpack.c.l.bf16 %v575
        %v578 = vsub.f32 %v489, %v552
        %v579 = vsub.f32 %v490, %v553
        %v580 = vmul.f32 %v578, 1.442695
        %v581 = vpow.pop %v580
        %v582 = vmul.f32 %v579, 1.442695
        %v583 = vpow.pop %v582
        %v584 = vmul.f32 %v581, %v571
        %v585 = vmul.f32 %v583, %v573
        %v586 = vld [vmem:[%s414] sm:$0xf]
        %v587 = vld [vmem:[%s414 + $0x4] sm:$0xf]
        %v588 = vunpack.c.l.bf16 %v586
        %v589 = vunpack.c.l.bf16 %v587
        %v590 = vstv %s483
        %v591 = vsub.f32 %v588, %v590
        %v592 = vsub.f32 %v589, %v590
        %v593 = vstv %s485
        %v594 = vmul.f32 %v591, %v593
        %v595 = vmul.f32 %v592, %v593
        %v596 = vadd.f32 %v584, %v594
        %v597 = vadd.f32 %v585, %v595
        %s598 = smul.addr %s491, 4
        %s599 = scalar_lea.vmem %s405, %s598 [#allocation9]
        %v600 = vld [vmem:[%s599] sm:$0xf]
        %v601 = vld [vmem:[%s599 + $0x4] sm:$0xf]
        %v602 = vunpack.c.l.bf16 %v600
        %v603 = vunpack.c.l.bf16 %v601
        %v604 = vsub.f32 %v496, %v552
        %v605 = vsub.f32 %v497, %v553
        %v606 = vmul.f32 %v604, 1.442695
        %v607 = vpow.pop %v606
        %v608 = vmul.f32 %v605, 1.442695
        %v609 = vpow.pop %v608
        %v610 = vmul.f32 %v607, %v571
        %v611 = vmul.f32 %v609, %v573
        %s612 = smul.addr %s491, 4
        %s613 = scalar_lea.vmem %s414, %s612 [#allocation10]
        %v614 = vld [vmem:[%s613] sm:$0xf]
        %v615 = vld [vmem:[%s613 + $0x4] sm:$0xf]
        %v616 = vunpack.c.l.bf16 %v614
        %v617 = vunpack.c.l.bf16 %v615
        %v618 = vsub.f32 %v616, %v590
        %v619 = vsub.f32 %v617, %v590
        %v620 = vmul.f32 %v618, %v593
        %v621 = vmul.f32 %v619, %v593
        %v622 = vadd.f32 %v610, %v620
        %v623 = vadd.f32 %v611, %v621
        %vm624 = vcmp.gt.f32.partialorder %v622, %v596
        %vm625 = vcmp.gt.f32.partialorder %v623, %v597
        %v626 = vsel %vm624, %v622, %v596
        %v627 = vsel %vm625, %v623, %v597
        %v628 = vsel %vm624, 1, 0
        %v629 = vsel %vm625, 1, 0
        %v630 = vsel %vm624, %v602, %v576
        %v631 = vsel %vm625, %v603, %v577
        %s632 = smul.addr %s516, 4
        %s633 = scalar_lea.vmem %s405, %s632 [#allocation9]
        %v634 = vld [vmem:[%s633] sm:$0xf]
        %v635 = vld [vmem:[%s633 + $0x4] sm:$0xf]
        %v636 = vunpack.c.l.bf16 %v634
        %v637 = vunpack.c.l.bf16 %v635
        %v638 = vsel %vm624, %v636, %v602
        %v639 = vsel %vm625, %v637, %v603
        %vm640 = vcmp.gt.f32.partialorder %v602, %v576
        %vm641 = vcmp.gt.f32.partialorder %v603, %v577
        %v642 = vmax.f32 %v576, %v602
        %v643 = vmax.f32 %v577, %v603
        %v644 = vmin.f32 %v602, %v576
        %v645 = vmin.f32 %v603, %v577
        %v646 = vsub.f32 %v644, %v642
        %v647 = vsub.f32 %v645, %v643
        %v648 = vmul.f32 %v646, 1.442695
        %v649 = vpow.pop %v648
        %v650 = vmul.f32 %v647, 1.442695
        %v651 = vpow.pop %v650
        %v652 = vsel %vm640, %v649, 1.0
        %v653 = vsel %vm641, %v651, 1.0
        %v654 = vsel %vm640, 1.0, %v649
        %v655 = vsel %vm641, 1.0, %v651
        %v656 = vadd.f32 %v652, %v654
        %v657 = vadd.f32 %v653, %v655
        %v658 = vsel %vm640, %v576, %v602
        %v659 = vsel %vm641, %v577, %v603
        %v660 = vsub.f32 %v521, %v552
        %v661 = vsub.f32 %v522, %v553
        %v662 = vmul.f32 %v660, 1.442695
        %v663 = vpow.pop %v662
        %v664 = vmul.f32 %v661, 1.442695
        %v665 = vpow.pop %v664
        %v666 = vmul.f32 %v663, %v571
        %v667 = vmul.f32 %v665, %v573
        %s668 = smul.addr %s516, 4
        %s669 = scalar_lea.vmem %s414, %s668 [#allocation10]
        %v670 = vld [vmem:[%s669] sm:$0xf]
        %v671 = vld [vmem:[%s669 + $0x4] sm:$0xf]
        %v672 = vunpack.c.l.bf16 %v670
        %v673 = vunpack.c.l.bf16 %v671
        %v674 = vsub.f32 %v672, %v590
        %v675 = vsub.f32 %v673, %v590
        %v676 = vmul.f32 %v674, %v593
        %v677 = vmul.f32 %v675, %v593
        %v678 = vadd.f32 %v666, %v676
        %v679 = vadd.f32 %v667, %v677
        %vm680 = vcmp.gt.f32.partialorder %v678, %v626
        %vm681 = vcmp.gt.f32.partialorder %v679, %v627
        %v682 = vsel %vm680, %v678, %v626
        %v683 = vsel %vm681, %v679, %v627
        %v684 = vsel %vm680, 2, %v628
        %v685 = vsel %vm681, 2, %v629
        %v686 = vsel %vm680, %v636, %v630
        %v687 = vsel %vm681, %v637, %v631
        %v688 = vsel %vm680, %v576, %v638
        %v689 = vsel %vm681, %v577, %v639
        %vm690 = vcmp.gt.f32.partialorder %v636, %v642
        %vm691 = vcmp.gt.f32.partialorder %v637, %v643
        %v692 = vmax.f32 %v642, %v636
        %v693 = vmax.f32 %v643, %v637
        %v694 = vmin.f32 %v636, %v642
        %v695 = vmin.f32 %v637, %v643
        %v696 = vsub.f32 %v694, %v692
        %v697 = vsub.f32 %v695, %v693
        %v698 = vmul.f32 %v696, 1.442695
        %v699 = vpow.pop %v698
        %v700 = vmul.f32 %v697, 1.442695
        %v701 = vpow.pop %v700
        %v702 = vsel %vm690, %v699, 1.0
        %v703 = vsel %vm691, %v701, 1.0
        %v704 = vmul.f32 %v656, %v702
        %v705 = vmul.f32 %v657, %v703
        %v706 = vsel %vm690, 1.0, %v699
        %v707 = vsel %vm691, 1.0, %v701
        %v708 = vadd.f32 %v704, %v706
        %v709 = vadd.f32 %v705, %v707
        %v710 = vmax.f32 %v658, %v636
        %v711 = vmax.f32 %v659, %v637
        %v712 = vsel %vm690, %v642, %v710
        %v713 = vsel %vm691, %v643, %v711
        %s714 = smul.addr %s543, 4
        %s715 = scalar_lea.vmem %s405, %s714 [#allocation9]
        %v716 = vld [vmem:[%s715] sm:$0xf]
        %v717 = vld [vmem:[%s715 + $0x4] sm:$0xf]
        %v718 = vunpack.c.l.bf16 %v716
        %v719 = vunpack.c.l.bf16 %v717
        %v720 = vsub.f32 %v548, %v552
        %v721 = vsub.f32 %v549, %v553
        %v722 = vmul.f32 %v720, 1.442695
        %v723 = vpow.pop %v722
        %v724 = vmul.f32 %v721, 1.442695
        %v725 = vpow.pop %v724
        %v726 = vmul.f32 %v723, %v571
        %v727 = vmul.f32 %v725, %v573
        %s728 = smul.addr %s543, 4
        %s729 = scalar_lea.vmem %s414, %s728 [#allocation10]
        %v730 = vld [vmem:[%s729] sm:$0xf]
        %v731 = vld [vmem:[%s729 + $0x4] sm:$0xf]
        %v732 = vunpack.c.l.bf16 %v730
        %v733 = vunpack.c.l.bf16 %v731
        %v734 = vsub.f32 %v732, %v590
        %v735 = vsub.f32 %v733, %v590
        %v736 = vmul.f32 %v734, %v593
        %v737 = vmul.f32 %v735, %v593
        %v738 = vadd.f32 %v726, %v736
        %v739 = vadd.f32 %v727, %v737
        %vm740 = vcmp.gt.f32.partialorder %v738, %v682
        %vm741 = vcmp.gt.f32.partialorder %v739, %v683
        %v742 = vsel %vm740, 3, %v684
        %v743 = vsel %vm741, 3, %v685
        %v744 = vsel %vm740, %v718, %v686
        %v745 = vsel %vm741, %v719, %v687
        %v746 = vsel %vm740, %v718, %v688
        %v747 = vsel %vm741, %v719, %v689
        %vm748 = vcmp.gt.f32.partialorder %v718, %v692
        %vm749 = vcmp.gt.f32.partialorder %v719, %v693
        %v750 = vmax.f32 %v692, %v718
        %v751 = vmax.f32 %v693, %v719
        %v752 = vmin.f32 %v718, %v692
        %v753 = vmin.f32 %v719, %v693
        %v754 = vsub.f32 %v752, %v750
        %v755 = vsub.f32 %v753, %v751
        %v756 = vmul.f32 %v754, 1.442695
        %v757 = vpow.pop %v756
        %v758 = vmul.f32 %v755, 1.442695
        %v759 = vpow.pop %v758
        %v760 = vsel %vm748, %v757, 1.0
        %v761 = vsel %vm749, %v759, 1.0
        %v762 = vmul.f32 %v708, %v760
        %v763 = vmul.f32 %v709, %v761
        %v764 = vsel %vm748, 1.0, %v757
        %v765 = vsel %vm749, 1.0, %v759
        %v766 = vadd.f32 %v762, %v764
        %v767 = vadd.f32 %v763, %v765
        %v768 = vmax.f32 %v712, %v718
        %v769 = vmax.f32 %v713, %v719
        %v770 = vsel %vm748, %v692, %v768
        %v771 = vsel %vm749, %v693, %v769
        %v772 = vlog2.pop %v766
        %v773 = vmul.f32 %v772, 0.6931472
        %v774 = vlog2.pop %v767
        %v775 = vmul.f32 %v774, 0.6931472
        %v776 = vadd.f32 %v750, %v773
        %v777 = vadd.f32 %v751, %v775
        %v778 = vrcp.pop %v766
        %v779 = vrcp.pop %v767
        %v780 = vsub.f32 %v776, %v744
        %v781 = vsub.f32 %v777, %v745
        %v782 = vsub.f32 %v776, %v746
        %v783 = vsub.f32 %v777, %v747
        %v784 = vstv %s486
        %v785 = vmul.f32 %v784, %v782
        %v786 = vmul.f32 %v784, %v783
        %v787 = vsub.f32 %v780, %v785
        %v788 = vsub.f32 %v781, %v786
        %789 = vst [vmem:[%s462] sm:$0xff] %v787
        %790 = vst [vmem:[%s462 + $0x8] sm:$0xff] %v788
        %v791 = vsub.f32 %v770, %v750
        %v792 = vsub.f32 %v771, %v751
        %v793 = vmul.f32 %v791, 1.442695
        %v794 = vpow.pop %v793
        %v795 = vmul.f32 %v792, 1.442695
        %v796 = vpow.pop %v795
        %v797 = vsub.f32 1.0, %v794
        %v798 = vsub.f32 1.0, %v796
        %v799 = vmul.f32 %v797, %v778
        %v800 = vmul.f32 %v798, %v779
        %v801 = vsub.f32 1.0, %v799
        %v802 = vsub.f32 1.0, %v800
        %803 = vst [vmem:[%s469] sm:$0xff] %v801
        %804 = vst [vmem:[%s469 + $0x8] sm:$0xff] %v802
        %805 = vst [vmem:[%s476] sm:$0xff] %v742
        %806 = vst [vmem:[%s476 + $0x8] sm:$0xff] %v743
        %s807 = sand.u32 %s204, 1
        %s808 = scalar_lea.sflag [#allocation5], %s807
        %s809 = sand.u32 %s204, 1
        %s810 = smul.addr %s809, 16
        %s811 = scalar_lea.vmem [#allocation13], %s810
        %s812 = sand.u32 %s35, 1
        %s813 = scalar_lea.sflag [#allocation15], %s812
        %s814 = sand.u32 %s232, 1
        %s815 = smul.addr %s814, 16
        %s816 = scalar_lea.vmem [#allocation14], %s815
        %s817 = sand.u32 %s35, 1
        %s818 = scalar_lea.sflag [#allocation15], %s817
        %s819 = sand.u32 %s260, 1
        %s820 = smul.addr %s819, 16
        %s821 = scalar_lea.vmem [#allocation16], %s820
        // Predicated region
        $region65: #{tpu_custom_call.1} parent=43 // pred_check
          %p822 = pneg %p214
        $region66: #{tpu_custom_call.1} parent=43 // pred_check_branch
          %824 = sbr.rel (%p822) target = $region68
        $region67: #{tpu_custom_call.1} parent=43 // pred_region
          %s825 = smul.u32 2, %s40
          %s827 = ssub.s32 256, 256
          %828 = vsyncadd %s808, %s827
          %s829 = smul.addr %s39, 2
          %s830 = sadd.s32 %s825, %s829
          %s831 = smul.addr %s830, 128
          %s832 = scalar_lea.hbm %s6, %s831
          %s833 = sshll.u32 %s811, 4
          %s834 = int_to_ptr.vmem [resolvable:$true] %s833
          %839 = dma.vmem_to_hbm [thread:$0]  %s834, 256, %s832, %s808, 128, 128, 8
        $region68: #{tpu_custom_call.1} parent=43 // pred_fallthru
          _
        // Predicated region
        $region69: #{tpu_custom_call.1} parent=43 // pred_check
          %p840 = pneg %p242
        $region70: #{tpu_custom_call.1} parent=43 // pred_check_branch
          %842 = sbr.rel (%p840) target = $region72
        $region71: #{tpu_custom_call.1} parent=43 // pred_region
          %s843 = smul.u32 2, %s40
          %s845 = ssub.s32 256, 256
          %846 = vsyncadd %s813, %s845
          %s847 = smul.addr %s39, 2
          %s848 = sadd.s32 %s843, %s847
          %s849 = smul.addr %s848, 128
          %s850 = scalar_lea.hbm %s7, %s849
          %s851 = sshll.u32 %s816, 4
          %s852 = int_to_ptr.vmem [resolvable:$true] %s851
          %857 = dma.vmem_to_hbm [thread:$0]  %s852, 256, %s850, %s813, 128, 128, 8
        $region72: #{tpu_custom_call.1} parent=43 // pred_fallthru
          _
        // Predicated region
        $region73: #{tpu_custom_call.1} parent=43 // pred_check
          %p858 = pneg %p270
        $region74: #{tpu_custom_call.1} parent=43 // pred_check_branch
          %860 = sbr.rel (%p858) target = $region76
        $region75: #{tpu_custom_call.1} parent=43 // pred_region
          %s861 = smul.u32 2, %s40
          %s863 = ssub.s32 256, 256
          %864 = vsyncadd %s818, %s863
          %s865 = smul.addr %s39, 2
          %s866 = sadd.s32 %s861, %s865
          %s867 = smul.addr %s866, 128
          %s868 = scalar_lea.hbm %s8, %s867
          %s869 = sshll.u32 %s821, 4
          %s870 = int_to_ptr.vmem [resolvable:$true] %s869
          %875 = dma.vmem_to_hbm [thread:$0]  %s870, 256, %s868, %s818, 128, 128, 8
        $region76: #{tpu_custom_call.1} parent=43 // pred_fallthru
          _
      $region44: #{tpu_custom_call.1} parent=5 // pred_fallthru
        _
      %p876 = scmp.le.s32.totalorder 2, %s30
      // Predicated region
      $region77: #{tpu_custom_call.1} parent=5 // pred_check
        %p877 = pneg %p876
      $region78: #{tpu_custom_call.1} parent=5 // pred_check_branch
        %879 = sbr.rel (%p877) target = $region80
      $region79: #{tpu_custom_call.1} parent=5 // pred_region
        %s880 = ssub.s32 %s30, 2
        // Predicated region
        $region81: #{tpu_custom_call.1} parent=79 // pred_check
          %p881 = pneg %p220
        $region82: #{tpu_custom_call.1} parent=79 // pred_check_branch
          %883 = sbr.rel (%p881) target = $region84
        $region83: #{tpu_custom_call.1} parent=79 // pred_region
          %s884 = sand.u32 %s205, 1
          %s885 = scalar_lea.sflag [#allocation5], %s884
          %s886 = sand.u32 %s205, 1
          %s887 = smul.addr %s886, 16
          %s888 = scalar_lea.vmem [#allocation13], %s887
          %889 = dma.done %s885, 256
        $region84: #{tpu_custom_call.1} parent=79 // pred_fallthru
          _
        // Predicated region
        $region85: #{tpu_custom_call.1} parent=79 // pred_check
          %p890 = pneg %p248
        $region86: #{tpu_custom_call.1} parent=79 // pred_check_branch
          %892 = sbr.rel (%p890) target = $region88
        $region87: #{tpu_custom_call.1} parent=79 // pred_region
          %s893 = sand.u32 %s36, 1
          %s894 = scalar_lea.sflag [#allocation15], %s893
          %s895 = sand.u32 %s233, 1
          %s896 = smul.addr %s895, 16
          %s897 = scalar_lea.vmem [#allocation14], %s896
          %898 = dma.done %s894, 256
        $region88: #{tpu_custom_call.1} parent=79 // pred_fallthru
          _
        // Predicated region
        $region89: #{tpu_custom_call.1} parent=79 // pred_check
          %p899 = pneg %p276
        $region90: #{tpu_custom_call.1} parent=79 // pred_check_branch
          %901 = sbr.rel (%p899) target = $region92
        $region91: #{tpu_custom_call.1} parent=79 // pred_region
          %s902 = sand.u32 %s36, 1
          %s903 = scalar_lea.sflag [#allocation15], %s902
          %s904 = sand.u32 %s261, 1
          %s905 = smul.addr %s904, 16
          %s906 = scalar_lea.vmem [#allocation16], %s905
          %907 = dma.done %s903, 256
        $region92: #{tpu_custom_call.1} parent=79 // pred_fallthru
          _
      $region80: #{tpu_custom_call.1} parent=5 // pred_fallthru
        _
    $region6: #{tpu_custom_call.1} parent=1 // loop_footer
      %s34 = sadd.s32 1, %s30
    $region7: #{tpu_custom_call.1} parent=1 // loop_footer_branch
      %29 = sbr.rel target = $region3
    $region8: #{tpu_custom_call.1} parent=1 // loop_exit
      _
    %908 = vsyncpa [#allocation4], 1
    %s909 = scalar_lea.sflag [#allocation4], 1
    %910 = vsyncpa %s909, 1
    %911 = vsyncpa [#allocation11], 1
    %s912 = scalar_lea.sflag [#allocation11], 1
    %913 = vsyncpa %s912, 1
    %914 = vsyncpa [#allocation5], 1
    %s915 = scalar_lea.sflag [#allocation5], 1
    %916 = vsyncpa %s915, 1
    %917 = vsyncpa [#allocation15], 1
    %s918 = scalar_lea.sflag [#allocation15], 1
    %919 = vsyncpa %s918, 1
    %920 = vsyncpa [#allocation6], 1
    %s921 = scalar_lea.sflag [#allocation6], 1
    %922 = vsyncpa %s921, 1
    %923 = vsyncpa [#allocation8], 1

</llo_original>
